<compile_context>
chip_gen: v5e
topology: v5e:2x2
jax: 0.10.0
libtpu: 0.0.40
codegen_flags: <defaults>
</compile_context>

<pallas_src>
import functools

import jax
import jax.numpy as jnp
from jax.experimental import pallas as pl
from jax.experimental.pallas import tpu as pltpu

_LANE = 128
_MAX_ROWS_PER_BLOCK = 2048  # 2048 * 128 * 4 B = 1 MiB per f32 block


def _scaling_kernel(bias_ref, inv_scale_ref, x_ref, o_ref, *, num_channels):
    # Grid axis 0 enumerates (n, c) pairs in row-major order; recover channel.
    c = pl.program_id(0) % num_channels
    b = bias_ref[c]         # scalar read from SMEM
    s = inv_scale_ref[c]    # scalar read from SMEM
    # (x - shift) / scale  ==  x * (1/scale) + (-shift/scale): one VPU mul+add.
    o_ref[...] = x_ref[...] * s + b


def scaling_layer(inp, shift, scale):
    """inp: (N, C, H, W); shift/scale: (C,) buffers. Returns (inp - shift) / scale."""
    N, C, H, W = inp.shape
    HW = H * W
    dtype = inp.dtype

    # Fold the divide into precomputed per-channel coefficients (wrapper-side,
    # 2*C scalars; ~1 ulp difference vs. an explicit divide).
    inv_scale = (1.0 / scale).astype(dtype)
    bias = (-shift / scale).astype(dtype)

    # Lane-dense, copy-free flat layout: (N*C, R, 128).
    x = inp.reshape(N * C, HW)
    pad = (-HW) % _LANE
    if pad:  # rare fallback for spatial sizes not divisible by 128
        x = jnp.pad(x, ((0, 0), (0, pad)))
    HWp = HW + pad
    R = HWp // _LANE
    x = x.reshape(N * C, R, _LANE)

    # Row tile: as big as possible up to ~1 MiB; multiple of 8 when actually tiling.
    if R <= _MAX_ROWS_PER_BLOCK:
        tr = R
    else:
        tr = (_MAX_ROWS_PER_BLOCK // 8) * 8

    grid = (N * C, pl.cdiv(R, tr))

    kernel = functools.partial(_scaling_kernel, num_channels=C)

    out = pl.pallas_call(
        kernel,
        out_shape=jax.ShapeDtypeStruct((N * C, R, _LANE), dtype),
        grid_spec=pltpu.PrefetchScalarGridSpec(
            num_scalar_prefetch=0,
            grid=grid,
            in_specs=[
                pl.BlockSpec(memory_space=pltpu.MemorySpace.SMEM),  # bias      (C,)
                pl.BlockSpec(memory_space=pltpu.MemorySpace.SMEM),  # 1/scale   (C,)
                pl.BlockSpec((1, tr, _LANE), lambda i, j: (i, j, 0)),
            ],
            out_specs=pl.BlockSpec((1, tr, _LANE), lambda i, j: (i, j, 0)),
        ),
        compiler_params=pltpu.CompilerParams(
            dimension_semantics=("parallel", "parallel"),
        ),
    )(bias, inv_scale, x)

    out = out.reshape(N * C, HWp)
    if pad:
        out = out[:, :HW]
    return out.reshape(N, C, H, W)


if __name__ == "__main__":
    # Deterministic buffers exactly as in the PyTorch module __init__.
    shift = jnp.array([-0.030, -0.088, -0.188], dtype=jnp.float32)
    scale = jnp.array([0.458, 0.448, 0.450], dtype=jnp.float32)

    # Example input: batch=2, channels=3 (RGB, as the module implies), 16x16 spatial.
    key = jax.random.PRNGKey(0)
    x = jax.random.normal(key, (2, 3, 16, 16), dtype=jnp.float32)

    out = jax.block_until_ready(scaling_layer(x, shift, scale))

    # Reference check in plain JAX (mirrors PyTorch broadcasting / divide).
    ref = (x - shift[None, :, None, None]) / scale[None, :, None, None]
    assert out.shape == x.shape and out.dtype == x.dtype
    assert jnp.allclose(out, ref, atol=1e-5, rtol=1e-5), float(
        jnp.max(jnp.abs(out - ref))
    )

    print("KERNEL_OK")
</pallas_src>

<mosaic_0001>
module attributes {stable_mosaic.version = 11 : i64} {
  func.func @_scaling_kernel(%arg0: i32, %arg1: i32, %arg2: memref<3xf32, #tpu.memory_space<smem>>, %arg3: memref<3xf32, #tpu.memory_space<smem>>, %arg4: memref<1x2x128xf32, #tpu.memory_space<vmem>>, %arg5: memref<1x2x128xf32, #tpu.memory_space<vmem>>) attributes {dimension_semantics = [#tpu.dimension_semantics<parallel>, #tpu.dimension_semantics<parallel>], iteration_bounds = array<i64: 6, 1>, scalar_prefetch = 0 : i64, scratch_operands = 0 : i64, tpu.core_type = #tpu.core_type<tc>, window_params = [{transform_indices = @transform_0, window_bounds = array<i64: 3>}, {transform_indices = @transform_1, window_bounds = array<i64: 3>}, {transform_indices = @transform_2, window_bounds = array<i64: 1, 2, 128>}, {transform_indices = @transform_3, window_bounds = array<i64: 1, 2, 128>}]} {
    %c3_i32 = arith.constant 3 : i32
    %c0_i32 = arith.constant 0 : i32
    %0 = arith.cmpi eq, %c3_i32, %c0_i32 : i32
    %c1_i32 = arith.constant 1 : i32
    %1 = arith.select %0, %c1_i32, %c3_i32 : i32
    %2 = arith.remsi %arg0, %1 : i32
    %c0_i32_0 = arith.constant 0 : i32
    %3 = arith.cmpi ne, %2, %c0_i32_0 : i32
    %c0_i32_1 = arith.constant 0 : i32
    %4 = arith.cmpi slt, %2, %c0_i32_1 : i32
    %c0_i32_2 = arith.constant 0 : i32
    %5 = arith.cmpi slt, %1, %c0_i32_2 : i32
    %6 = arith.xori %4, %5 : i1
    %7 = arith.andi %6, %3 : i1
    %8 = arith.addi %2, %1 : i32
    %9 = arith.select %7, %8, %2 : i32
    %10 = arith.index_cast %9 : i32 to index
    %11 = memref.load %arg2[%10] : memref<3xf32, #tpu.memory_space<smem>>
    %12 = arith.index_cast %9 : i32 to index
    %13 = memref.load %arg3[%12] : memref<3xf32, #tpu.memory_space<smem>>
    %c0 = arith.constant 0 : index
    %c0_3 = arith.constant 0 : index
    %c0_4 = arith.constant 0 : index
    %14 = vector.load %arg4[%c0, %c0_3, %c0_4] : memref<1x2x128xf32, #tpu.memory_space<vmem>>, vector<1x2x128xf32>
    %15 = vector.broadcast %13 : f32 to vector<1x2x128xf32>
    %16 = arith.mulf %14, %15 : vector<1x2x128xf32>
    %17 = vector.broadcast %11 : f32 to vector<1x2x128xf32>
    %18 = arith.addf %16, %17 : vector<1x2x128xf32>
    %c0_5 = arith.constant 0 : index
    %c0_6 = arith.constant 0 : index
    %c0_7 = arith.constant 0 : index
    %19 = vector.load %arg5[%c0_5, %c0_6, %c0_7] : memref<1x2x128xf32, #tpu.memory_space<vmem>>, vector<1x2x128xf32>
    tpu.vector_store %arg5[%c0_5, %c0_6, %c0_7], %18 {strides = array<i32>} : memref<1x2x128xf32, #tpu.memory_space<vmem>>, vector<1x2x128xf32>,
    return
  }
  func.func @transform_0(%arg0: i32, %arg1: i32) -> i32 {
    %c0_i32 = arith.constant 0 : i32
    %c0_i32_0 = arith.constant 0 : i32
    return %c0_i32 : i32
  }
  func.func @transform_1(%arg0: i32, %arg1: i32) -> i32 {
    %c0_i32 = arith.constant 0 : i32
    %c0_i32_0 = arith.constant 0 : i32
    return %c0_i32 : i32
  }
  func.func @transform_2(%arg0: i32, %arg1: i32) -> (i32, i32, i32) {
    %c0_i32 = arith.constant 0 : i32
    %c0_i32_0 = arith.constant 0 : i32
    return %arg0, %arg1, %c0_i32 : i32, i32, i32
  }
  func.func @transform_3(%arg0: i32, %arg1: i32) -> (i32, i32, i32) {
    %c0_i32 = arith.constant 0 : i32
    %c0_i32_0 = arith.constant 0 : i32
    return %arg0, %arg1, %c0_i32 : i32, i32, i32
  }
}

</mosaic_0001>

<llo_original>
// kernel: tpu_custom_call.1
$region0: #{tpu_custom_call.1}
  #allocation0 [shape = 'u32[]', space=smem, size = 0x4, offset = 0x4, fixed_abs, tag = 'smem constant byte address 0x4 - core index']
  #allocation1 [shape = 'u32[72,128]{1,0:T(1,128)}', space=vmem, size = 0x9000, scoped, tag = 'internal scratch']
  %s0 = inlined_call_operand.hbm [shape: f32[3], index: 0, kind: input, shape index: {}]
  %s1 = inlined_call_operand.hbm [shape: f32[3], index: 1, kind: input, shape index: {}]
  %s2 = inlined_call_operand.hbm [shape: f32[6,2,128], index: 2, kind: input, shape index: {}]
  %s3 = inlined_call_operand.hbm [shape: f32[6,2,128], index: 3, kind: output, shape index: {}]
  %s4 = sld [smem:[#allocation0]]
  $region57: #{tpu_custom_call.1} parent=0
    _
  %s6 = ssub.s32 1, %s4
  %s7 = scalar_select 0, %s6, %s4
  $region1: #{tpu_custom_call.1} parent=0
    #allocation2 [shape = 'u8[512]{0}', space=smem, size = 0x200, scoped, tag = 'input window, operand 0, single buffered']
    #allocation3 [shape = 's32[2]{0}', space=sflag, size = 0x8, scoped, tag = 'scoped memory for tpu_custom_call.1']
    #allocation4 [shape = 's32[2]{0}', space=sflag, size = 0x8, scoped, tag = 'scoped memory for tpu_custom_call.1']
    #allocation5 [shape = 's32[2]{0}', space=sflag, size = 0x8, scoped, tag = 'scoped memory for tpu_custom_call.1']
    #allocation6 [shape = 'u8[512]{0}', space=smem, size = 0x200, scoped, tag = 'input window, operand 1, single buffered']
    #allocation7 [shape = 's32[1]{0}', space=sflag, size = 0x4, scoped, tag = 'scoped memory for tpu_custom_call.1']
    #allocation8 [shape = 'u8[2048]{0}', space=vmem, size = 0x800, scoped, tag = 'input window, operand 2']
    #allocation9 [shape = 'u8[2048]{0}', space=vmem, size = 0x800, scoped, tag = 'output window, operand 0']
    %8 = vsyncpa [#allocation5], 0
    %9 = vsyncpa [#allocation7], 0
    %10 = vsyncpa [#allocation3], 0
    %s11 = scalar_lea.sflag [#allocation3], 1
    %12 = vsyncpa %s11, 0
    %13 = vsyncpa [#allocation4], 0
    %s14 = scalar_lea.sflag [#allocation4], 1
    %15 = vsyncpa %s14, 0
    loop: start=0, step=1, limit=8
    $region2: #{tpu_custom_call.1} parent=1 // loop_pre_header
      _
    $region3: #{tpu_custom_call.1} parent=1 // loop_header
      %s17 = sphi 0, %s21
      %p18 = scmp.ge.s32.totalorder %s17, 8
      %s24 = sphi 0, %s36
      %s25 = sphi 0, %s32
      %s26 = sphi 0, %s24
      %s27 = sphi 0, %s25
      %s28 = sphi 0, %s26
      %s29 = sphi 0, %s27
      %s37 = sphi 0, %s37
      %s39 = sphi 0, %s37
      %s40 = sphi 0, %s39
      %s54 = sphi 0, %s40
      %s58 = sphi 0, %s58
      %s60 = sphi 0, %s58
      %s61 = sphi 0, %s60
      %s75 = sphi 0, %s61
      %s83 = sphi 0, %s85
      %s86 = sphi 0, %s83
      %s87 = sphi 0, %s86
      %s103 = sphi 0, %s87
      %s111 = sphi 0, %s113
      %s114 = sphi 0, %s111
      %s115 = sphi 0, %s114
      %s131 = sphi 0, %s115
    $region4: #{tpu_custom_call.1} parent=1 // loop_header_branch
      %20 = sbr.rel (%p18) target = $region8
    $region5: #{tpu_custom_call.1} parent=1 // loop_body
      %s22 = ssub.s32 %s17, 1
      %s23 = ssub.s32 %s17, 2
      %s30 = sadd.s32 1, %s25
      %p31 = scmp.ge.s32.totalorder %s30, 1
      %s32 = scalar_select %p31, 0, %s30
      %s33 = sadd.s32 1, %s24
      %s34 = scalar_select %p31, %s33, %s24
      %p35 = scmp.ge.s32.totalorder %s34, 6
      %s36 = scalar_select %p35, 0, %s34
      %s38 = sadd.s32 %s37, 1
      %p41 = scmp.eq.s32.totalorder %s17, 5
      %p42 = scmp.ne.s32.totalorder %s37, %s39
      %p43 = scmp.eq.s32.totalorder %s17, 0
      %p44 = por %p42, %p43
      %p45 = scmp.ne.s32.totalorder %s37, %s39
      %p46 = scmp.eq.s32.totalorder %s22, 5
      %p47 = por %p45, %p46
      %p48 = scmp.ne.s32.totalorder %s39, %s40
      %p49 = scmp.eq.s32.totalorder %s22, 0
      %p50 = por %p48, %p49
      %p51 = scmp.ne.s32.totalorder %s39, %s40
      %p52 = scmp.eq.s32.totalorder %s23, 5
      %p53 = por %p51, %p52
      %p55 = scmp.ne.s32.totalorder %s40, %s54
      %p56 = scmp.eq.s32.totalorder %s23, 0
      %p57 = por %p55, %p56
      %s59 = sadd.s32 %s58, 1
      %p62 = scmp.eq.s32.totalorder %s17, 5
      %p63 = scmp.ne.s32.totalorder %s58, %s60
      %p64 = scmp.eq.s32.totalorder %s17, 0
      %p65 = por %p63, %p64
      %p66 = scmp.ne.s32.totalorder %s58, %s60
      %p67 = scmp.eq.s32.totalorder %s22, 5
      %p68 = por %p66, %p67
      %p69 = scmp.ne.s32.totalorder %s60, %s61
      %p70 = scmp.eq.s32.totalorder %s22, 0
      %p71 = por %p69, %p70
      %p72 = scmp.ne.s32.totalorder %s60, %s61
      %p73 = scmp.eq.s32.totalorder %s23, 5
      %p74 = por %p72, %p73
      %p76 = scmp.ne.s32.totalorder %s61, %s75
      %p77 = scmp.eq.s32.totalorder %s23, 0
      %p78 = por %p76, %p77
      %s79 = ssub.s32 %s24, %s36
      %s80 = ssub.s32 %s25, %s32
      %s81 = sor.u32 %s79, %s80
      %p82 = scmp.eq.s32.totalorder %s81, 0
      %s84 = sadd.s32 %s83, 1
      %s85 = scalar_select %p82, %s83, %s84
      %p88 = pneg %p82
      %p89 = scmp.eq.s32.totalorder %s17, 5
      %p90 = por %p88, %p89
      %p91 = scmp.ne.s32.totalorder %s83, %s86
      %p92 = scmp.eq.s32.totalorder %s17, 0
      %p93 = por %p91, %p92
      %p94 = scmp.ne.s32.totalorder %s83, %s86
      %p95 = scmp.eq.s32.totalorder %s22, 5
      %p96 = por %p94, %p95
      %p97 = scmp.ne.s32.totalorder %s86, %s87
      %p98 = scmp.eq.s32.totalorder %s22, 0
      %p99 = por %p97, %p98
      %p100 = scmp.ne.s32.totalorder %s86, %s87
      %p101 = scmp.eq.s32.totalorder %s23, 5
      %p102 = por %p100, %p101
      %p104 = scmp.ne.s32.totalorder %s87, %s103
      %p105 = scmp.eq.s32.totalorder %s23, 0
      %p106 = por %p104, %p105
      %s107 = ssub.s32 %s24, %s36
      %s108 = ssub.s32 %s25, %s32
      %s109 = sor.u32 %s107, %s108
      %p110 = scmp.eq.s32.totalorder %s109, 0
      %s112 = sadd.s32 %s111, 1
      %s113 = scalar_select %p110, %s111, %s112
      %p116 = pneg %p110
      %p117 = scmp.eq.s32.totalorder %s17, 5
      %p118 = por %p116, %p117
      %p119 = scmp.ne.s32.totalorder %s111, %s114
      %p120 = scmp.eq.s32.totalorder %s17, 0
      %p121 = por %p119, %p120
      %p122 = scmp.ne.s32.totalorder %s111, %s114
      %p123 = scmp.eq.s32.totalorder %s22, 5
      %p124 = por %p122, %p123
      %p125 = scmp.ne.s32.totalorder %s114, %s115
      %p126 = scmp.eq.s32.totalorder %s22, 0
      %p127 = por %p125, %p126
      %p128 = scmp.ne.s32.totalorder %s114, %s115
      %p129 = scmp.eq.s32.totalorder %s23, 5
      %p130 = por %p128, %p129
      %p132 = scmp.ne.s32.totalorder %s115, %s131
      %p133 = scmp.eq.s32.totalorder %s23, 0
      %p134 = por %p132, %p133
      %p135 = scmp.le.s32.totalorder 1, %s17
      %p136 = scmp.lt.s32.totalorder %s17, 7
      %p137 = pnand %p135, %p136
      %p138 = pneg %p137
      // Predicated region
      $region9: #{tpu_custom_call.1} parent=5 // pred_check
        _
      $region10: #{tpu_custom_call.1} parent=5 // pred_check_branch
        %140 = sbr.rel (%p137) target = $region12
      $region11: #{tpu_custom_call.1} parent=5 // pred_region
        %s141 = ssub.s32 %s17, 1
        // Predicated region
        $region13: #{tpu_custom_call.1} parent=11 // pred_check
          %p142 = pneg %p50
        $region14: #{tpu_custom_call.1} parent=11 // pred_check_branch
          %144 = sbr.rel (%p142) target = $region16
        $region15: #{tpu_custom_call.1} parent=11 // pred_region
          %146 = vsyncadd [#allocation5], 0
          %s148 = sshll.u32 %s0, 4
          %s149 = int_to_ptr.hbm [resolvable:$true] %s148
          %151 = dma.hbm_to_smem %s149, 16, [#allocation2], [#allocation5]
        $region16: #{tpu_custom_call.1} parent=11 // pred_fallthru
          _
        // Predicated region
        $region17: #{tpu_custom_call.1} parent=11 // pred_check
          %p152 = pneg %p71
        $region18: #{tpu_custom_call.1} parent=11 // pred_check_branch
          %154 = sbr.rel (%p152) target = $region20
        $region19: #{tpu_custom_call.1} parent=11 // pred_region
          %156 = vsyncadd [#allocation7], 0
          %s158 = sshll.u32 %s1, 4
          %s159 = int_to_ptr.hbm [resolvable:$true] %s158
          %161 = dma.hbm_to_smem %s159, 16, [#allocation6], [#allocation7]
        $region20: #{tpu_custom_call.1} parent=11 // pred_fallthru
          _
      $region12: #{tpu_custom_call.1} parent=5 // pred_fallthru
        _
      %p162 = scmp.lt.s32.totalorder %s17, 6
      // Predicated region
      $region21: #{tpu_custom_call.1} parent=5 // pred_check
        %p163 = pneg %p162
      $region22: #{tpu_custom_call.1} parent=5 // pred_check_branch
        %165 = sbr.rel (%p163) target = $region24
      $region23: #{tpu_custom_call.1} parent=5 // pred_region
        // Predicated region
        $region25: #{tpu_custom_call.1} parent=23 // pred_check
          %p166 = pneg %p93
        $region26: #{tpu_custom_call.1} parent=23 // pred_check_branch
          %168 = sbr.rel (%p166) target = $region28
        $region27: #{tpu_custom_call.1} parent=23 // pred_region
          %s169 = sand.u32 %s83, 1
          %s170 = scalar_lea.sflag [#allocation3], %s169
          %s171 = sand.u32 %s83, 1
          %s172 = smul.addr %s171, 2
          %s173 = scalar_lea.vmem [#allocation8], %s172
          %175 = vsyncadd %s170, 0
          %s176 = sadd.s32 %s25, %s24
          %s177 = smul.addr %s176, 2
          %s178 = scalar_lea.hbm %s2, %s177
          %s180 = sshll.u32 %s178, 4
          %s181 = int_to_ptr.hbm [resolvable:$true] %s180
          %s182 = sshll.u32 %s173, 4
          %s183 = int_to_ptr.vmem [resolvable:$true] %s182
          %185 = dma.hbm_to_vmem [thread:$0]  %s181, 32, %s183, %s170
        $region28: #{tpu_custom_call.1} parent=23 // pred_fallthru
          _
      $region24: #{tpu_custom_call.1} parent=5 // pred_fallthru
        _
      %p186 = scmp.le.s32.totalorder 1, %s17
      %p187 = scmp.lt.s32.totalorder %s17, 7
      %p188 = pnand %p186, %p187
      %p189 = pneg %p188
      // Predicated region
      $region29: #{tpu_custom_call.1} parent=5 // pred_check
        _
      $region30: #{tpu_custom_call.1} parent=5 // pred_check_branch
        %191 = sbr.rel (%p188) target = $region32
      $region31: #{tpu_custom_call.1} parent=5 // pred_region
        %s192 = ssub.s32 %s17, 1
        // Predicated region
        $region33: #{tpu_custom_call.1} parent=31 // pred_check
          %p193 = pneg %p50
        $region34: #{tpu_custom_call.1} parent=31 // pred_check_branch
          %195 = sbr.rel (%p193) target = $region36
        $region35: #{tpu_custom_call.1} parent=31 // pred_region
          %197 = dma.done [#allocation5], 16
        $region36: #{tpu_custom_call.1} parent=31 // pred_fallthru
          _
        // Predicated region
        $region37: #{tpu_custom_call.1} parent=31 // pred_check
          %p198 = pneg %p71
        $region38: #{tpu_custom_call.1} parent=31 // pred_check_branch
          %200 = sbr.rel (%p198) target = $region40
        $region39: #{tpu_custom_call.1} parent=31 // pred_region
          %202 = dma.done [#allocation7], 16
        $region40: #{tpu_custom_call.1} parent=31 // pred_fallthru
          _
        %s203 = sand.u32 %s86, 1
        %s204 = scalar_lea.sflag [#allocation3], %s203
        %s205 = sand.u32 %s86, 1
        %s206 = smul.addr %s205, 2
        %s207 = scalar_lea.vmem [#allocation8], %s206
        // Predicated region
        $region41: #{tpu_custom_call.1} parent=31 // pred_check
          %p208 = pneg %p99
        $region42: #{tpu_custom_call.1} parent=31 // pred_check_branch
          %210 = sbr.rel (%p208) target = $region44
        $region43: #{tpu_custom_call.1} parent=31 // pred_region
          %212 = dma.done %s204, 32
        $region44: #{tpu_custom_call.1} parent=31 // pred_fallthru
          _
        %213 = sfence
        %p214 = pneg %p50
        %p215 = pneg %p47
        %p216 = pneg %p71
        %p217 = pneg %p68
        %s218 = sand.u32 %s86, 1
        %s219 = scalar_lea.sflag [#allocation3], %s218
        %s220 = sand.u32 %s86, 1
        %s221 = smul.addr %s220, 2
        %s222 = scalar_lea.vmem [#allocation8], %s221
        %p223 = pneg %p99
        %p224 = pneg %p96
        %p225 = pneg %p127
        %p226 = pneg %p124
        %s227 = sand.u32 %s114, 1
        %s228 = scalar_lea.sflag [#allocation4], %s227
        %s229 = sand.u32 %s114, 1
        %s230 = smul.addr %s229, 2
        %s231 = scalar_lea.vmem [#allocation9], %s230
        %p232 = scmp.lt.s32.totalorder %s26, 0
        %s233 = ssub.s32 0, %s26
        %s234 = scalar_select %p232, %s233, %s26
        %s235 = sdiv.u32.pop %s234, 3
        %s236 = srem.u32.pop %s234, 3
        %s237 = ssub.s32 0, %s236
        %s238 = scalar_select %p232, %s237, %s236
        %p239 = scmp.ne.s32.totalorder %s238, 0
        %p240 = scmp.lt.s32.totalorder %s238, 0
        %p241 = pnand %p240, %p239
        %p242 = pneg %p241
        %s243 = sadd.s32 %s238, 3
        %s244 = scalar_select %p242, %s243, %s238
        %s245 = sld [smem:[#allocation2 + %s244]]
        %s246 = sld [smem:[#allocation6 + %s244]]
        %v247 = vld [vmem:[%s207] sm:$0x3]
        %v248 = vstv %s246
        %v249 = vmul.f32 %v247, %v248
        %v250 = vstv %s245
        %v251 = vadd.f32 %v249, %v250
        %252 = vst [vmem:[%s231] sm:$0x3] %v251
        %s253 = sand.u32 %s114, 1
        %s254 = scalar_lea.sflag [#allocation4], %s253
        %s255 = sand.u32 %s114, 1
        %s256 = smul.addr %s255, 2
        %s257 = scalar_lea.vmem [#allocation9], %s256
        // Predicated region
        $region45: #{tpu_custom_call.1} parent=31 // pred_check
          %p258 = pneg %p124
        $region46: #{tpu_custom_call.1} parent=31 // pred_check_branch
          %260 = sbr.rel (%p258) target = $region48
        $region47: #{tpu_custom_call.1} parent=31 // pred_region
          %262 = vsyncadd %s254, 0
          %s263 = sadd.s32 %s27, %s26
          %s264 = smul.addr %s263, 2
          %s265 = scalar_lea.hbm %s3, %s264
          %s267 = sshll.u32 %s257, 4
          %s268 = int_to_ptr.vmem [resolvable:$true] %s267
          %s269 = sshll.u32 %s265, 4
          %s270 = int_to_ptr.hbm [resolvable:$true] %s269
          %272 = dma.vmem_to_hbm [thread:$0]  %s268, 32, %s270, %s254
        $region48: #{tpu_custom_call.1} parent=31 // pred_fallthru
          _
      $region32: #{tpu_custom_call.1} parent=5 // pred_fallthru
        _
      %p273 = scmp.le.s32.totalorder 2, %s17
      // Predicated region
      $region49: #{tpu_custom_call.1} parent=5 // pred_check
        %p274 = pneg %p273
      $region50: #{tpu_custom_call.1} parent=5 // pred_check_branch
        %276 = sbr.rel (%p274) target = $region52
      $region51: #{tpu_custom_call.1} parent=5 // pred_region
        %s277 = ssub.s32 %s17, 2
        // Predicated region
        $region53: #{tpu_custom_call.1} parent=51 // pred_check
          %p278 = pneg %p130
        $region54: #{tpu_custom_call.1} parent=51 // pred_check_branch
          %280 = sbr.rel (%p278) target = $region56
        $region55: #{tpu_custom_call.1} parent=51 // pred_region
          %s281 = sand.u32 %s115, 1
          %s282 = scalar_lea.sflag [#allocation4], %s281
          %s283 = sand.u32 %s115, 1
          %s284 = smul.addr %s283, 2
          %s285 = scalar_lea.vmem [#allocation9], %s284
          %287 = dma.done %s282, 32
        $region56: #{tpu_custom_call.1} parent=51 // pred_fallthru
          _
      $region52: #{tpu_custom_call.1} parent=5 // pred_fallthru
        _
    $region6: #{tpu_custom_call.1} parent=1 // loop_footer
      %s21 = sadd.s32 1, %s17
    $region7: #{tpu_custom_call.1} parent=1 // loop_footer_branch
      %16 = sbr.rel target = $region3
    $region8: #{tpu_custom_call.1} parent=1 // loop_exit
      _
    %288 = vsyncpa [#allocation3], 1
    %s289 = scalar_lea.sflag [#allocation3], 1
    %290 = vsyncpa %s289, 1
    %291 = vsyncpa [#allocation4], 1
    %s292 = scalar_lea.sflag [#allocation4], 1
    %293 = vsyncpa %s292, 1
    %294 = vsyncpa [#allocation5], 1
    %s295 = scalar_lea.sflag [#allocation5], 1
    %296 = vsyncpa %s295, 1
    %297 = vsyncpa [#allocation7], 1

</llo_original>
